<compile_context>
chip_gen: v7x
topology: tpu7x:2x2x1
jax: 0.10.0
libtpu: 0.0.40
codegen_flags: <defaults>
</compile_context>

<pallas_src>
import math

import jax
import jax.numpy as jnp
from jax.experimental import pallas as pl
from jax.experimental.pallas import tpu as pltpu


def _round_up(x, m):
    return (x + m - 1) // m * m


def _vmem_limit_bytes():
    """~85% of physical VMEM (generation-aware), with a safe fallback."""
    try:
        cap = int(pltpu.get_tpu_info().vmem_capacity_bytes)
    except Exception:
        cap = 128 * 1024 * 1024
    return int(cap * 0.85)


def _num_tensorcores():
    """Best-effort TensorCore count (v7x has 2 per chip; v5e/v6e have 1)."""
    try:
        d = jax.devices()[0]
        v = getattr(d, "num_cores", None)
        if isinstance(v, int) and v > 0:
            return v
        kind = str(getattr(d, "device_kind", "")).lower()
        if "v7" in kind:
            return 2
    except Exception:
        pass
    return 1


def _select_tiles(M, d_model, vocab, in_bytes, out_bytes, vmem_limit):
    """Largest (tm, tn) whose double-buffered working set fits the VMEM budget.

    tm (row tile) is the weight-reuse factor -> maximize tm first, then tn.
    """
    budget = int(0.65 * vmem_limit)          # headroom for Mosaic scratch/sems
    M8 = _round_up(M, 8)
    V128 = _round_up(vocab, 128)
    tm_cands = [t for t in (1024, 512, 256, 128, 64, 32, 16, 8) if t <= M8] or [M8]
    tn_cands = [t for t in (2048, 1024, 512, 256, 128) if t <= V128] or [V128]

    for tm in tm_cands:
        for tn in tn_cands:
            est = (2 * tm * d_model * in_bytes      # x tiles (double-buffered)
                   + 2 * d_model * tn * in_bytes    # weight tiles
                   + 2 * 8 * tn * 4                 # bias tiles (sublane-padded)
                   + 2 * tm * tn * out_bytes        # output tiles
                   + 2 * tm * 128 * 4)              # m/l scratch (lane-padded)
            if est <= budget:
                return tm, tn
    return tm_cands[-1], tn_cands[-1]


def _proj_logsoftmax_kernel(x_ref, w_ref, b_ref, o_ref, m_ref, l_ref):
    # grid = (row_tiles, 2 passes, vocab_tiles)
    p = pl.program_id(1)
    j = pl.program_id(2)

    @pl.when((p == 0) & (j == 0))
    def _init():
        m_ref[...] = jnp.full(m_ref.shape, -jnp.inf, dtype=m_ref.dtype)
        l_ref[...] = jnp.zeros(l_ref.shape, dtype=l_ref.dtype)

    # (tm, tn) logits tile: MXU matmul with f32 accumulation, bias add in f32.
    logits = jnp.dot(x_ref[...], w_ref[...], preferred_element_type=jnp.float32)
    logits = logits + b_ref[...].astype(jnp.float32)

    @pl.when(p == 0)
    def _stats():
        m_prev = m_ref[...]
        m_new = jnp.maximum(m_prev, jnp.max(logits, axis=-1, keepdims=True))
        l_ref[...] = (l_ref[...] * jnp.exp(m_prev - m_new)
                      + jnp.sum(jnp.exp(logits - m_new), axis=-1, keepdims=True))
        m_ref[...] = m_new
        # Output window is parked on block (i, 0) for all of pass 0; keep the
        # buffer initialized so any (unexpected) early writeback is never
        # uninitialized VMEM.  Pass 1 overwrites every block with final values.
        o_ref[...] = logits.astype(o_ref.dtype)

    @pl.when(p == 1)
    def _write():
        lse = m_ref[...] + jnp.log(l_ref[...])
        o_ref[...] = (logits - lse).astype(o_ref.dtype)


def projection_layer(x, weight_t, bias, *, tm=None, tn=None,
                     out_dtype=jnp.float32, compute_dtype=jnp.bfloat16):
    """log_softmax(x @ weight_t + bias, axis=-1).

    x: (batch, seq, d_model); weight_t: (d_model, vocab); bias: (vocab,).
    compute_dtype: MXU operand dtype (default bf16; pass None to keep inputs
    as-is).  Accumulation and all softmax math stay f32.
    """
    batch, seq, d_model = x.shape
    d_model_w, vocab = weight_t.shape
    assert d_model_w == d_model and bias.shape == (vocab,)

    M = batch * seq
    x2d = x.reshape(M, d_model)
    w = weight_t
    b = bias.astype(jnp.float32)

    # bf16 (default) MXU operands; skip the cast if already stored in that dtype.
    if compute_dtype is not None:
        if x2d.dtype != compute_dtype:
            x2d = x2d.astype(compute_dtype)
        if w.dtype != compute_dtype:
            w = w.astype(compute_dtype)

    in_bytes = max(jnp.dtype(x2d.dtype).itemsize, jnp.dtype(w.dtype).itemsize)
    out_bytes = jnp.dtype(out_dtype).itemsize
    vmem_limit = _vmem_limit_bytes()

    # Tile selection: largest VMEM-fitting tiles unless the caller pinned them.
    tm_sel, tn_sel = _select_tiles(M, d_model, vocab, in_bytes, out_bytes, vmem_limit)
    tm_eff = _round_up(max(tm, 8), 8) if tm is not None else tm_sel
    tn_eff = _round_up(max(tn, 128), 128) if tn is not None else tn_sel
    tm_eff = min(tm_eff, _round_up(M, 8))
    tn_eff = min(tn_eff, _round_up(vocab, 128))

    # Multi-TensorCore chips (v7x): make sure the "parallel" row axis has >= 2
    # tiles so the second core gets work.
    if _num_tensorcores() >= 2 and M > 8 and _round_up(M, tm_eff) // tm_eff < 2:
        tm_eff = min(tm_eff, max(8, _round_up((M + 1) // 2, 8)))

    M_pad = _round_up(M, tm_eff)
    V_pad = _round_up(vocab, tn_eff)

    if M_pad != M:
        x2d = jnp.pad(x2d, ((0, M_pad - M), (0, 0)))
    if V_pad != vocab:
        # Padded vocab columns: zero weight + very negative *finite* bias so
        # they never contribute to the log-sum-exp; sliced off after the call.
        neg_big = float(jnp.finfo(jnp.float32).min) / 2.0
        w = jnp.pad(w, ((0, 0), (0, V_pad - vocab)))
        b = jnp.pad(b, (0, V_pad - vocab), constant_values=neg_big)

    b2d = b.reshape(1, V_pad)
    grid = (M_pad // tm_eff, 2, V_pad // tn_eff)

    out = pl.pallas_call(
        _proj_logsoftmax_kernel,
        out_shape=jax.ShapeDtypeStruct((M_pad, V_pad), out_dtype),
        grid_spec=pltpu.PrefetchScalarGridSpec(
            num_scalar_prefetch=0,
            grid=grid,
            in_specs=[
                # activations: resident across the pass/vocab axes
                pl.BlockSpec((tm_eff, d_model), lambda i, p, j: (i, 0)),
                # weight: streamed one vocab tile at a time
                pl.BlockSpec((d_model, tn_eff), lambda i, p, j: (0, j)),
                # bias tile
                pl.BlockSpec((1, tn_eff), lambda i, p, j: (0, j)),
            ],
            # Pass 0 parks the output window on block (i, 0) -> single M x V
            # writeback; pass 1 visits every (i, j) block exactly once.
            out_specs=pl.BlockSpec((tm_eff, tn_eff), lambda i, p, j: (i, p * j)),
            scratch_shapes=[pltpu.VMEM((tm_eff, 1), jnp.float32),   # running max
                            pltpu.VMEM((tm_eff, 1), jnp.float32)],  # running sum-exp
        ),
        compiler_params=pltpu.CompilerParams(
            dimension_semantics=("parallel", "arbitrary", "arbitrary"),
            vmem_limit_bytes=int(vmem_limit),
        ),
    )(x2d, w, b2d)

    return out[:M, :vocab].reshape(batch, seq, vocab)


if __name__ == "__main__":
    # Small shapes consistent with the module's forward: (batch, seq, d_model)
    batch, seq, d_model, vocab = 2, 8, 64, 1000  # vocab deliberately not /128

    key = jax.random.PRNGKey(0)
    kx, kw, kb = jax.random.split(key, 3)

    # Deterministic init mirroring nn.Linear(d_model, vocab):
    # uniform(-1/sqrt(d_model), 1/sqrt(d_model)); PyTorch weight is (vocab, d_model).
    bound = 1.0 / math.sqrt(d_model)
    weight = jax.random.uniform(kw, (vocab, d_model), jnp.float32, -bound, bound)
    bias = jax.random.uniform(kb, (vocab,), jnp.float32, -bound, bound)
    weight_t = weight.T

    x = jax.random.normal(kx, (batch, seq, d_model), jnp.float32)

    # Reference in plain JAX (f32)
    ref = jax.nn.log_softmax(x @ weight_t + bias, axis=-1)

    # f32-operand path (tight check)
    out_f32 = projection_layer(x, weight_t, bias, compute_dtype=None)
    out_f32 = jax.block_until_ready(out_f32)
    assert out_f32.shape == (batch, seq, vocab)
    assert out_f32.dtype == jnp.float32
    assert jnp.allclose(out_f32, ref, atol=1e-4, rtol=1e-4), \
        f"f32 path mismatch: max abs err {float(jnp.max(jnp.abs(out_f32 - ref)))}"

    # Default bf16-operand MXU path; weight/activations stored bf16 at rest so
    # projection_layer does no per-call cast.  Accumulation/softmax stay f32.
    weight_t_bf16 = weight_t.astype(jnp.bfloat16)
    x_bf16 = x.astype(jnp.bfloat16)
    out_bf16 = projection_layer(x_bf16, weight_t_bf16, bias)
    out_bf16 = jax.block_until_ready(out_bf16)
    assert out_bf16.shape == (batch, seq, vocab)
    assert jnp.allclose(out_bf16, ref, atol=5e-2, rtol=5e-2), \
        f"bf16 path mismatch: max abs err {float(jnp.max(jnp.abs(out_bf16 - ref)))}"

    print("KERNEL_OK")
</pallas_src>

<mosaic_0001>
module attributes {stable_mosaic.version = 11 : i64} {
  func.func @_proj_logsoftmax_kernel(%arg0: i32, %arg1: i32, %arg2: i32, %arg3: memref<16x64xf32, #tpu.memory_space<vmem>>, %arg4: memref<64x1024xf32, #tpu.memory_space<vmem>>, %arg5: memref<1x1024xf32, #tpu.memory_space<vmem>>, %arg6: memref<16x1024xf32, #tpu.memory_space<vmem>>, %arg7: memref<16x1xf32, #tpu.memory_space<vmem>>, %arg8: memref<16x1xf32, #tpu.memory_space<vmem>>) attributes {dimension_semantics = [#tpu.dimension_semantics<parallel>, #tpu.dimension_semantics<arbitrary>, #tpu.dimension_semantics<arbitrary>], iteration_bounds = array<i64: 1, 2, 1>, scalar_prefetch = 0 : i64, scratch_operands = 2 : i64, tpu.core_type = #tpu.core_type<tc>, window_params = [{transform_indices = @transform_0, window_bounds = array<i64: 16, 64>}, {transform_indices = @transform_1, window_bounds = array<i64: 64, 1024>}, {transform_indices = @transform_2, window_bounds = array<i64: 1, 1024>}, {transform_indices = @transform_3, window_bounds = array<i64: 16, 1024>}]} {
    %c0_i32 = arith.constant 0 : i32
    %0 = arith.cmpi eq, %arg1, %c0_i32 : i32
    %c0_i32_0 = arith.constant 0 : i32
    %1 = arith.cmpi eq, %arg2, %c0_i32_0 : i32
    %2 = arith.andi %0, %1 : i1
    %3 = arith.extui %2 : i1 to i32
    %c0_i32_1 = arith.constant 0 : i32
    %4 = arith.cmpi ne, %3, %c0_i32_1 : i32
    scf.if %4 {
      %cst_10 = arith.constant 0xFF800000 : f32
      %17 = vector.broadcast %cst_10 : f32 to vector<16x1xf32>
      %c0_11 = arith.constant 0 : index
      %c0_12 = arith.constant 0 : index
      %18 = vector.load %arg7[%c0_11, %c0_12] : memref<16x1xf32, #tpu.memory_space<vmem>>, vector<16x1xf32>
      tpu.vector_store %arg7[%c0_11, %c0_12], %17 {strides = array<i32>} : memref<16x1xf32, #tpu.memory_space<vmem>>, vector<16x1xf32>,
      %cst_13 = arith.constant 0.000000e+00 : f32
      %19 = vector.broadcast %cst_13 : f32 to vector<16x1xf32>
      %c0_14 = arith.constant 0 : index
      %c0_15 = arith.constant 0 : index
      %20 = vector.load %arg8[%c0_14, %c0_15] : memref<16x1xf32, #tpu.memory_space<vmem>>, vector<16x1xf32>
      tpu.vector_store %arg8[%c0_14, %c0_15], %19 {strides = array<i32>} : memref<16x1xf32, #tpu.memory_space<vmem>>, vector<16x1xf32>,
    } else {
    }
    %c0 = arith.constant 0 : index
    %c0_2 = arith.constant 0 : index
    %5 = vector.load %arg3[%c0, %c0_2] : memref<16x64xf32, #tpu.memory_space<vmem>>, vector<16x64xf32>
    %c0_3 = arith.constant 0 : index
    %c0_4 = arith.constant 0 : index
    %6 = vector.load %arg4[%c0_3, %c0_4] : memref<64x1024xf32, #tpu.memory_space<vmem>>, vector<64x1024xf32>
    %cst = arith.constant dense<0.000000e+00> : vector<16x1024xf32>
    %7 = tpu.matmul %5, %6, %cst {dimension_numbers = #tpu.dot_dimension_numbers<[1], [0], [0], [1], [0, 0, 1, 1], [], []>} : vector<16x64xf32>, vector<64x1024xf32>, vector<16x1024xf32> -> vector<16x1024xf32>
    %c0_5 = arith.constant 0 : index
    %c0_6 = arith.constant 0 : index
    %8 = vector.load %arg5[%c0_5, %c0_6] : memref<1x1024xf32, #tpu.memory_space<vmem>>, vector<1x1024xf32>
    %9 = vector.broadcast %8 : vector<1x1024xf32> to vector<16x1024xf32>
    %10 = arith.addf %7, %9 : vector<16x1024xf32>
    %c0_i32_7 = arith.constant 0 : i32
    %11 = arith.cmpi eq, %arg1, %c0_i32_7 : i32
    %12 = arith.extui %11 : i1 to i32
    %c0_i32_8 = arith.constant 0 : i32
    %13 = arith.cmpi ne, %12, %c0_i32_8 : i32
    scf.if %13 {
      %c0_10 = arith.constant 0 : index
      %c0_11 = arith.constant 0 : index
      %17 = vector.load %arg7[%c0_10, %c0_11] : memref<16x1xf32, #tpu.memory_space<vmem>>, vector<16x1xf32>
      %cst_12 = arith.constant dense<0xFF800000> : vector<16xf32>
      %18 = vector.multi_reduction <maximumf>, %10, %cst_12 [1] : vector<16x1024xf32> to vector<16xf32>
      %19 = vector.shape_cast %18 : vector<16xf32> to vector<16x1xf32>
      %20 = arith.maximumf %17, %19 : vector<16x1xf32>
      %c0_13 = arith.constant 0 : index
      %c0_14 = arith.constant 0 : index
      %21 = vector.load %arg8[%c0_13, %c0_14] : memref<16x1xf32, #tpu.memory_space<vmem>>, vector<16x1xf32>
      %22 = arith.subf %17, %20 : vector<16x1xf32>
      %23 = math.exp %22 : vector<16x1xf32>
      %24 = arith.mulf %21, %23 : vector<16x1xf32>
      %25 = vector.broadcast %20 : vector<16x1xf32> to vector<16x1024xf32>
      %26 = arith.subf %10, %25 : vector<16x1024xf32>
      %27 = math.exp %26 : vector<16x1024xf32>
      %cst_15 = arith.constant dense<0.000000e+00> : vector<16xf32>
      %28 = vector.multi_reduction <add>, %27, %cst_15 [1] : vector<16x1024xf32> to vector<16xf32>
      %29 = vector.shape_cast %28 : vector<16xf32> to vector<16x1xf32>
      %30 = arith.addf %24, %29 : vector<16x1xf32>
      %c0_16 = arith.constant 0 : index
      %c0_17 = arith.constant 0 : index
      %31 = vector.load %arg8[%c0_16, %c0_17] : memref<16x1xf32, #tpu.memory_space<vmem>>, vector<16x1xf32>
      tpu.vector_store %arg8[%c0_16, %c0_17], %30 {strides = array<i32>} : memref<16x1xf32, #tpu.memory_space<vmem>>, vector<16x1xf32>,
      %c0_18 = arith.constant 0 : index
      %c0_19 = arith.constant 0 : index
      %32 = vector.load %arg7[%c0_18, %c0_19] : memref<16x1xf32, #tpu.memory_space<vmem>>, vector<16x1xf32>
      tpu.vector_store %arg7[%c0_18, %c0_19], %20 {strides = array<i32>} : memref<16x1xf32, #tpu.memory_space<vmem>>, vector<16x1xf32>,
      %c0_20 = arith.constant 0 : index
      %c0_21 = arith.constant 0 : index
      %33 = vector.load %arg6[%c0_20, %c0_21] : memref<16x1024xf32, #tpu.memory_space<vmem>>, vector<16x1024xf32>
      tpu.vector_store %arg6[%c0_20, %c0_21], %10 {strides = array<i32>} : memref<16x1024xf32, #tpu.memory_space<vmem>>, vector<16x1024xf32>,
    } else {
    }
    %c1_i32 = arith.constant 1 : i32
    %14 = arith.cmpi eq, %arg1, %c1_i32 : i32
    %15 = arith.extui %14 : i1 to i32
    %c0_i32_9 = arith.constant 0 : i32
    %16 = arith.cmpi ne, %15, %c0_i32_9 : i32
    scf.if %16 {
      %c0_10 = arith.constant 0 : index
      %c0_11 = arith.constant 0 : index
      %17 = vector.load %arg7[%c0_10, %c0_11] : memref<16x1xf32, #tpu.memory_space<vmem>>, vector<16x1xf32>
      %c0_12 = arith.constant 0 : index
      %c0_13 = arith.constant 0 : index
      %18 = vector.load %arg8[%c0_12, %c0_13] : memref<16x1xf32, #tpu.memory_space<vmem>>, vector<16x1xf32>
      %19 = math.log %18 : vector<16x1xf32>
      %20 = arith.addf %17, %19 : vector<16x1xf32>
      %21 = vector.broadcast %20 : vector<16x1xf32> to vector<16x1024xf32>
      %22 = arith.subf %10, %21 : vector<16x1024xf32>
      %c0_14 = arith.constant 0 : index
      %c0_15 = arith.constant 0 : index
      %23 = vector.load %arg6[%c0_14, %c0_15] : memref<16x1024xf32, #tpu.memory_space<vmem>>, vector<16x1024xf32>
      tpu.vector_store %arg6[%c0_14, %c0_15], %22 {strides = array<i32>} : memref<16x1024xf32, #tpu.memory_space<vmem>>, vector<16x1024xf32>,
    } else {
    }
    return
  }
  func.func @transform_0(%arg0: i32, %arg1: i32, %arg2: i32) -> (i32, i32) {
    %c0_i32 = arith.constant 0 : i32
    %c0_i32_0 = arith.constant 0 : i32
    return %arg0, %c0_i32 : i32, i32
  }
  func.func @transform_1(%arg0: i32, %arg1: i32, %arg2: i32) -> (i32, i32) {
    %c0_i32 = arith.constant 0 : i32
    %c0_i32_0 = arith.constant 0 : i32
    return %c0_i32, %arg2 : i32, i32
  }
  func.func @transform_2(%arg0: i32, %arg1: i32, %arg2: i32) -> (i32, i32) {
    %c0_i32 = arith.constant 0 : i32
    %c0_i32_0 = arith.constant 0 : i32
    return %c0_i32, %arg2 : i32, i32
  }
  func.func @transform_3(%arg0: i32, %arg1: i32, %arg2: i32) -> (i32, i32) {
    %0 = arith.muli %arg1, %arg2 : i32
    %c0_i32 = arith.constant 0 : i32
    return %arg0, %0 : i32, i32
  }
}

</mosaic_0001>

<llo_original>
// kernel: tpu_custom_call.1
$region0: #{tpu_custom_call.1}
  #allocation0 [shape = 'u32[]', space=smem, size = 0x4, offset = 0x4, fixed_abs, tag = 'smem constant byte address 0x4 - core index']
  #allocation1 [shape = 'u32[144,128]{1,0:T(1,128)}', space=vmem, size = 0x12000, scoped, tag = 'internal scratch']
  #allocation2 [shape = 'f32[16,1]{1,0:T(8,128)}', space=vmem, size = 0x2000, scoped, tag = 'scratch operand']
  #allocation3 [shape = 'f32[16,1]{1,0:T(8,128)}', space=vmem, size = 0x2000, scoped, tag = 'scratch operand']
  %s0 = inlined_call_operand.hbm [shape: f32[16,64], index: 0, kind: input, shape index: {}]
  %s1 = inlined_call_operand.hbm [shape: f32[64,1024], index: 1, kind: input, shape index: {}]
  %s2 = inlined_call_operand.hbm [shape: f32[1,1024], index: 2, kind: input, shape index: {}]
  %s3 = inlined_call_operand.hbm [shape: f32[16,1024], index: 3, kind: output, shape index: {}]
  %s4 = sld [smem:[#allocation0]]
  $region69: #{tpu_custom_call.1} parent=0
    _
  %s6 = ssub.s32 1, %s4
  %s7 = scalar_select 0, %s6, %s4
  $region1: #{tpu_custom_call.1} parent=0
    #allocation4 [shape = 'u8[8192]{0}', space=vmem, size = 0x2000, scoped, tag = 'input window, operand 0, single buffered']
    #allocation5 [shape = 's32[2]{0}', space=sflag, size = 0x8, scoped, tag = 'scoped memory for tpu_custom_call.1']
    #allocation6 [shape = 's32[2]{0}', space=sflag, size = 0x8, scoped, tag = 'scoped memory for tpu_custom_call.1']
    #allocation7 [shape = 'u8[262144]{0}', space=vmem, size = 0x40000, scoped, tag = 'input window, operand 1, single buffered']
    #allocation8 [shape = 's32[1]{0}', space=sflag, size = 0x4, scoped, tag = 'scoped memory for tpu_custom_call.1']
    #allocation9 [shape = 'u8[4096]{0}', space=vmem, size = 0x1000, scoped, tag = 'input window, operand 2, single buffered']
    #allocation10 [shape = 'u8[131072]{0}', space=vmem, size = 0x20000, scoped, tag = 'output window, operand 0']
    %8 = vsyncpa [#allocation5], 0
    %9 = vsyncpa [#allocation8], 0
    %10 = vsyncpa [#allocation6], 0
    %s11 = scalar_lea.sflag [#allocation6], 1
    %12 = vsyncpa %s11, 0
    loop: start=0, step=1, limit=4
    $region2: #{tpu_custom_call.1} parent=1 // loop_pre_header
      _
    $region3: #{tpu_custom_call.1} parent=1 // loop_header
      %s14 = sphi 0, %s18
      %p15 = scmp.ge.s32.totalorder %s14, 4
      %s21 = sphi 0, %s40
      %s22 = sphi 0, %s36
      %s23 = sphi 0, %s32
      %s24 = sphi 0, %s21
      %s25 = sphi 0, %s22
      %s26 = sphi 0, %s23
      %s27 = sphi 0, %s24
      %s28 = sphi 0, %s25
      %s29 = sphi 0, %s26
      %s43 = sphi 0, %s45
      %s46 = sphi 0, %s43
      %s47 = sphi 0, %s46
      %s63 = sphi 0, %s47
      %s69 = sphi 0, %s71
      %s72 = sphi 0, %s69
      %s73 = sphi 0, %s72
      %s89 = sphi 0, %s73
      %s95 = sphi 0, %s97
      %s98 = sphi 0, %s95
      %s99 = sphi 0, %s98
      %s115 = sphi 0, %s99
      %s125 = sphi 0, %s127
      %s128 = sphi 0, %s125
      %s129 = sphi 0, %s128
      %s145 = sphi 0, %s129
    $region4: #{tpu_custom_call.1} parent=1 // loop_header_branch
      %17 = sbr.rel (%p15) target = $region8
    $region5: #{tpu_custom_call.1} parent=1 // loop_body
      %s19 = ssub.s32 %s14, 1
      %s20 = ssub.s32 %s14, 2
      %s30 = sadd.s32 1, %s23
      %p31 = scmp.ge.s32.totalorder %s30, 1
      %s32 = scalar_select %p31, 0, %s30
      %s33 = sadd.s32 1, %s22
      %s34 = scalar_select %p31, %s33, %s22
      %p35 = scmp.ge.s32.totalorder %s34, 2
      %s36 = scalar_select %p35, 0, %s34
      %s37 = sadd.s32 1, %s21
      %s38 = scalar_select %p35, %s37, %s21
      %p39 = scmp.ge.s32.totalorder %s38, 1
      %s40 = scalar_select %p39, 0, %s38
      %s41 = ssub.s32 %s21, %s40
      %p42 = scmp.eq.s32.totalorder %s41, 0
      %s44 = sadd.s32 %s43, 1
      %s45 = scalar_select %p42, %s43, %s44
      %p48 = pneg %p42
      %p49 = scmp.eq.s32.totalorder %s14, 1
      %p50 = por %p48, %p49
      %p51 = scmp.ne.s32.totalorder %s43, %s46
      %p52 = scmp.eq.s32.totalorder %s14, 0
      %p53 = por %p51, %p52
      %p54 = scmp.ne.s32.totalorder %s43, %s46
      %p55 = scmp.eq.s32.totalorder %s19, 1
      %p56 = por %p54, %p55
      %p57 = scmp.ne.s32.totalorder %s46, %s47
      %p58 = scmp.eq.s32.totalorder %s19, 0
      %p59 = por %p57, %p58
      %p60 = scmp.ne.s32.totalorder %s46, %s47
      %p61 = scmp.eq.s32.totalorder %s20, 1
      %p62 = por %p60, %p61
      %p64 = scmp.ne.s32.totalorder %s47, %s63
      %p65 = scmp.eq.s32.totalorder %s20, 0
      %p66 = por %p64, %p65
      %s67 = ssub.s32 %s23, %s32
      %p68 = scmp.eq.s32.totalorder %s67, 0
      %s70 = sadd.s32 %s69, 1
      %s71 = scalar_select %p68, %s69, %s70
      %p74 = pneg %p68
      %p75 = scmp.eq.s32.totalorder %s14, 1
      %p76 = por %p74, %p75
      %p77 = scmp.ne.s32.totalorder %s69, %s72
      %p78 = scmp.eq.s32.totalorder %s14, 0
      %p79 = por %p77, %p78
      %p80 = scmp.ne.s32.totalorder %s69, %s72
      %p81 = scmp.eq.s32.totalorder %s19, 1
      %p82 = por %p80, %p81
      %p83 = scmp.ne.s32.totalorder %s72, %s73
      %p84 = scmp.eq.s32.totalorder %s19, 0
      %p85 = por %p83, %p84
      %p86 = scmp.ne.s32.totalorder %s72, %s73
      %p87 = scmp.eq.s32.totalorder %s20, 1
      %p88 = por %p86, %p87
      %p90 = scmp.ne.s32.totalorder %s73, %s89
      %p91 = scmp.eq.s32.totalorder %s20, 0
      %p92 = por %p90, %p91
      %s93 = ssub.s32 %s23, %s32
      %p94 = scmp.eq.s32.totalorder %s93, 0
      %s96 = sadd.s32 %s95, 1
      %s97 = scalar_select %p94, %s95, %s96
      %p100 = pneg %p94
      %p101 = scmp.eq.s32.totalorder %s14, 1
      %p102 = por %p100, %p101
      %p103 = scmp.ne.s32.totalorder %s95, %s98
      %p104 = scmp.eq.s32.totalorder %s14, 0
      %p105 = por %p103, %p104
      %p106 = scmp.ne.s32.totalorder %s95, %s98
      %p107 = scmp.eq.s32.totalorder %s19, 1
      %p108 = por %p106, %p107
      %p109 = scmp.ne.s32.totalorder %s98, %s99
      %p110 = scmp.eq.s32.totalorder %s19, 0
      %p111 = por %p109, %p110
      %p112 = scmp.ne.s32.totalorder %s98, %s99
      %p113 = scmp.eq.s32.totalorder %s20, 1
      %p114 = por %p112, %p113
      %p116 = scmp.ne.s32.totalorder %s99, %s115
      %p117 = scmp.eq.s32.totalorder %s20, 0
      %p118 = por %p116, %p117
      %s119 = smul.u32 %s22, %s23
      %s120 = smul.u32 %s36, %s32
      %s121 = ssub.s32 %s21, %s40
      %s122 = ssub.s32 %s119, %s120
      %s123 = sor.u32 %s121, %s122
      %p124 = scmp.eq.s32.totalorder %s123, 0
      %s126 = sadd.s32 %s125, 1
      %s127 = scalar_select %p124, %s125, %s126
      %p130 = pneg %p124
      %p131 = scmp.eq.s32.totalorder %s14, 1
      %p132 = por %p130, %p131
      %p133 = scmp.ne.s32.totalorder %s125, %s128
      %p134 = scmp.eq.s32.totalorder %s14, 0
      %p135 = por %p133, %p134
      %p136 = scmp.ne.s32.totalorder %s125, %s128
      %p137 = scmp.eq.s32.totalorder %s19, 1
      %p138 = por %p136, %p137
      %p139 = scmp.ne.s32.totalorder %s128, %s129
      %p140 = scmp.eq.s32.totalorder %s19, 0
      %p141 = por %p139, %p140
      %p142 = scmp.ne.s32.totalorder %s128, %s129
      %p143 = scmp.eq.s32.totalorder %s20, 1
      %p144 = por %p142, %p143
      %p146 = scmp.ne.s32.totalorder %s129, %s145
      %p147 = scmp.eq.s32.totalorder %s20, 0
      %p148 = por %p146, %p147
      %p149 = scmp.le.s32.totalorder 1, %s14
      %p150 = scmp.lt.s32.totalorder %s14, 3
      %p151 = pnand %p149, %p150
      %p152 = pneg %p151
      // Predicated region
      $region9: #{tpu_custom_call.1} parent=5 // pred_check
        _
      $region10: #{tpu_custom_call.1} parent=5 // pred_check_branch
        %154 = sbr.rel (%p151) target = $region12
      $region11: #{tpu_custom_call.1} parent=5 // pred_region
        %s155 = ssub.s32 %s14, 1
        // Predicated region
        $region13: #{tpu_custom_call.1} parent=11 // pred_check
          %p156 = pneg %p59
        $region14: #{tpu_custom_call.1} parent=11 // pred_check_branch
          %158 = sbr.rel (%p156) target = $region16
        $region15: #{tpu_custom_call.1} parent=11 // pred_region
          %s159 = smul.u32 2, %s24
          %s161 = ssub.s32 256, 256
          %162 = vsyncadd [#allocation5], %s161
          %s163 = smul.addr %s159, 128
          %s164 = scalar_lea.hbm %s0, %s163
          %s165 = sshll.u32 [#allocation4], 4
          %s166 = int_to_ptr.vmem [resolvable:$true] %s165
          %171 = dma.hbm_to_vmem [thread:$0]  %s164, 256, %s166, [#allocation5], 128, 128, 8
        $region16: #{tpu_custom_call.1} parent=11 // pred_fallthru
          _
        // Predicated region
        $region17: #{tpu_custom_call.1} parent=11 // pred_check
          %p172 = pneg %p85
        $region18: #{tpu_custom_call.1} parent=11 // pred_check_branch
          %174 = sbr.rel (%p172) target = $region20
        $region19: #{tpu_custom_call.1} parent=11 // pred_region
          %s175 = smul.u32 8, %s26
          %s177 = ssub.s32 8192, 8192
          %178 = vsyncadd [#allocation8], %s177
          %s179 = smul.addr %s175, 128
          %s180 = scalar_lea.hbm %s1, %s179
          %s181 = sshll.u32 [#allocation7], 4
          %s182 = int_to_ptr.vmem [resolvable:$true] %s181
          %187 = dma.hbm_to_vmem [thread:$0]  %s180, 8192, %s182, [#allocation8], 1024, 1024, 64
        $region20: #{tpu_custom_call.1} parent=11 // pred_fallthru
          _
        // Predicated region
        $region21: #{tpu_custom_call.1} parent=11 // pred_check
          %p188 = pneg %p111
        $region22: #{tpu_custom_call.1} parent=11 // pred_check_branch
          %190 = sbr.rel (%p188) target = $region24
        $region23: #{tpu_custom_call.1} parent=11 // pred_region
          %s191 = smul.u32 8, %s26
          %s193 = ssub.s32 128, 128
          %194 = vsyncadd [#allocation8], %s193
          %s195 = smul.addr %s191, 16
          %s196 = scalar_lea.hbm %s2, %s195
          %s198 = sshll.u32 [#allocation9], 4
          %s199 = int_to_ptr.vmem [resolvable:$true] %s198
          %201 = dma.hbm_to_vmem [thread:$0]  %s196, 128, %s199, [#allocation8]
        $region24: #{tpu_custom_call.1} parent=11 // pred_fallthru
          _
      $region12: #{tpu_custom_call.1} parent=5 // pred_fallthru
        _
      %p202 = scmp.lt.s32.totalorder %s14, 2
      // Predicated region
      $region25: #{tpu_custom_call.1} parent=5 // pred_check
        %p203 = pneg %p202
      $region26: #{tpu_custom_call.1} parent=5 // pred_check_branch
        %205 = sbr.rel (%p203) target = $region28
      $region27: #{tpu_custom_call.1} parent=5 // pred_region
        _
      $region28: #{tpu_custom_call.1} parent=5 // pred_fallthru
        _
      %p206 = scmp.le.s32.totalorder 1, %s14
      %p207 = scmp.lt.s32.totalorder %s14, 3
      %p208 = pnand %p206, %p207
      %p209 = pneg %p208
      // Predicated region
      $region29: #{tpu_custom_call.1} parent=5 // pred_check
        _
      $region30: #{tpu_custom_call.1} parent=5 // pred_check_branch
        %211 = sbr.rel (%p208) target = $region32
      $region31: #{tpu_custom_call.1} parent=5 // pred_region
        %s212 = ssub.s32 %s14, 1
        // Predicated region
        $region33: #{tpu_custom_call.1} parent=31 // pred_check
          %p213 = pneg %p59
        $region34: #{tpu_custom_call.1} parent=31 // pred_check_branch
          %215 = sbr.rel (%p213) target = $region36
        $region35: #{tpu_custom_call.1} parent=31 // pred_region
          %216 = dma.done [#allocation5], 256
        $region36: #{tpu_custom_call.1} parent=31 // pred_fallthru
          _
        // Predicated region
        $region37: #{tpu_custom_call.1} parent=31 // pred_check
          %p217 = pneg %p85
        $region38: #{tpu_custom_call.1} parent=31 // pred_check_branch
          %219 = sbr.rel (%p217) target = $region40
        $region39: #{tpu_custom_call.1} parent=31 // pred_region
          %220 = dma.done [#allocation8], 8192
        $region40: #{tpu_custom_call.1} parent=31 // pred_fallthru
          _
        // Predicated region
        $region41: #{tpu_custom_call.1} parent=31 // pred_check
          %p221 = pneg %p111
        $region42: #{tpu_custom_call.1} parent=31 // pred_check_branch
          %223 = sbr.rel (%p221) target = $region44
        $region43: #{tpu_custom_call.1} parent=31 // pred_region
          %224 = dma.done [#allocation8], 128
        $region44: #{tpu_custom_call.1} parent=31 // pred_fallthru
          _
        %p225 = pneg %p59
        %p226 = pneg %p56
        %p227 = pneg %p85
        %p228 = pneg %p82
        %p229 = pneg %p111
        %p230 = pneg %p108
        %p231 = pneg %p141
        %p232 = pneg %p138
        %s233 = sand.u32 %s128, 1
        %s234 = scalar_lea.sflag [#allocation6], %s233
        %s235 = sand.u32 %s128, 1
        %s236 = smul.addr %s235, 128
        %s237 = scalar_lea.vmem [#allocation10], %s236
        %s238 = smul.u32 2, %s24
        %s239 = smul.u32 8, %s26
        %s240 = smul.u32 8, %s26
        %s241 = smul.u32 %s25, %s26
        %s242 = smul.u32 2, %s24
        %s243 = smul.u32 8, %s241
        %p244 = scmp.eq.s32.totalorder %s25, 0
        %p245 = scmp.eq.s32.totalorder %s26, 0
        %p246 = pnand %p244, %p245
        %p247 = pneg %p246
        // Predicated region
        $region45: #{tpu_custom_call.1} parent=31 // pred_check
          _
        $region46: #{tpu_custom_call.1} parent=31 // pred_check_branch
          %249 = sbr.rel (%p246) target = $region48
        $region47: #{tpu_custom_call.1} parent=31 // pred_region
          %vm250 = vcmask 7168
          %251 = vst.msk [vmem:[#allocation2] sm:$0xff] %vm250, -inf
          %252 = vst.msk [vmem:[#allocation2 + $0x8] sm:$0xff] %vm250, -inf
          %253 = vst.msk [vmem:[#allocation3] sm:$0xff] %vm250, 0.0
          %254 = vst.msk [vmem:[#allocation3 + $0x8] sm:$0xff] %vm250, 0.0
        $region48: #{tpu_custom_call.1} parent=31 // pred_fallthru
          _
        %v255 = vld [vmem:[#allocation4] sm:$0xff]
        %v256 = vld [vmem:[#allocation4 + $0x8] sm:$0xff]
        %v257 = vld [vmem:[#allocation7] sm:$0xff]
        %v258 = vld [vmem:[#allocation7 + $0x8] sm:$0xff]
        %v259 = vld [vmem:[#allocation7 + $0x10] sm:$0xff]
        %v260 = vld [vmem:[#allocation7 + $0x18] sm:$0xff]
        %v261 = vld [vmem:[#allocation7 + $0x20] sm:$0xff]
        %v262 = vld [vmem:[#allocation7 + $0x28] sm:$0xff]
        %v263 = vld [vmem:[#allocation7 + $0x30] sm:$0xff]
        %v264 = vld [vmem:[#allocation7 + $0x38] sm:$0xff]
        %v265 = vld [vmem:[#allocation7 + $0x40] sm:$0xff]
        %v266 = vld [vmem:[#allocation7 + $0x48] sm:$0xff]
        %v267 = vld [vmem:[#allocation7 + $0x50] sm:$0xff]
        %v268 = vld [vmem:[#allocation7 + $0x58] sm:$0xff]
        %v269 = vld [vmem:[#allocation7 + $0x60] sm:$0xff]
        %v270 = vld [vmem:[#allocation7 + $0x68] sm:$0xff]
        %v271 = vld [vmem:[#allocation7 + $0x70] sm:$0xff]
        %v272 = vld [vmem:[#allocation7 + $0x78] sm:$0xff]
        %v273 = vld [vmem:[#allocation7 + $0x80] sm:$0xff]
        %v274 = vld [vmem:[#allocation7 + $0x88] sm:$0xff]
        %v275 = vld [vmem:[#allocation7 + $0x90] sm:$0xff]
        %v276 = vld [vmem:[#allocation7 + $0x98] sm:$0xff]
        %v277 = vld [vmem:[#allocation7 + $0xa0] sm:$0xff]
        %v278 = vld [vmem:[#allocation7 + $0xa8] sm:$0xff]
        %v279 = vld [vmem:[#allocation7 + $0xb0] sm:$0xff]
        %v280 = vld [vmem:[#allocation7 + $0xb8] sm:$0xff]
        %v281 = vld [vmem:[#allocation7 + $0xc0] sm:$0xff]
        %v282 = vld [vmem:[#allocation7 + $0xc8] sm:$0xff]
        %v283 = vld [vmem:[#allocation7 + $0xd0] sm:$0xff]
        %v284 = vld [vmem:[#allocation7 + $0xd8] sm:$0xff]
        %v285 = vld [vmem:[#allocation7 + $0xe0] sm:$0xff]
        %v286 = vld [vmem:[#allocation7 + $0xe8] sm:$0xff]
        %v287 = vld [vmem:[#allocation7 + $0xf0] sm:$0xff]
        %v288 = vld [vmem:[#allocation7 + $0xf8] sm:$0xff]
        %v289 = vld [vmem:[#allocation7 + $0x100] sm:$0xff]
        %v290 = vld [vmem:[#allocation7 + $0x108] sm:$0xff]
        %v291 = vld [vmem:[#allocation7 + $0x110] sm:$0xff]
        %v292 = vld [vmem:[#allocation7 + $0x118] sm:$0xff]
        %v293 = vld [vmem:[#allocation7 + $0x120] sm:$0xff]
        %v294 = vld [vmem:[#allocation7 + $0x128] sm:$0xff]
        %v295 = vld [vmem:[#allocation7 + $0x130] sm:$0xff]
        %v296 = vld [vmem:[#allocation7 + $0x138] sm:$0xff]
        %v297 = vld [vmem:[#allocation7 + $0x140] sm:$0xff]
        %v298 = vld [vmem:[#allocation7 + $0x148] sm:$0xff]
        %v299 = vld [vmem:[#allocation7 + $0x150] sm:$0xff]
        %v300 = vld [vmem:[#allocation7 + $0x158] sm:$0xff]
        %v301 = vld [vmem:[#allocation7 + $0x160] sm:$0xff]
        %v302 = vld [vmem:[#allocation7 + $0x168] sm:$0xff]
        %v303 = vld [vmem:[#allocation7 + $0x170] sm:$0xff]
        %v304 = vld [vmem:[#allocation7 + $0x178] sm:$0xff]
        %v305 = vld [vmem:[#allocation7 + $0x180] sm:$0xff]
        %v306 = vld [vmem:[#allocation7 + $0x188] sm:$0xff]
        %v307 = vld [vmem:[#allocation7 + $0x190] sm:$0xff]
        %v308 = vld [vmem:[#allocation7 + $0x198] sm:$0xff]
        %v309 = vld [vmem:[#allocation7 + $0x1a0] sm:$0xff]
        %v310 = vld [vmem:[#allocation7 + $0x1a8] sm:$0xff]
        %v311 = vld [vmem:[#allocation7 + $0x1b0] sm:$0xff]
        %v312 = vld [vmem:[#allocation7 + $0x1b8] sm:$0xff]
        %v313 = vld [vmem:[#allocation7 + $0x1c0] sm:$0xff]
        %v314 = vld [vmem:[#allocation7 + $0x1c8] sm:$0xff]
        %v315 = vld [vmem:[#allocation7 + $0x1d0] sm:$0xff]
        %v316 = vld [vmem:[#allocation7 + $0x1d8] sm:$0xff]
        %v317 = vld [vmem:[#allocation7 + $0x1e0] sm:$0xff]
        %v318 = vld [vmem:[#allocation7 + $0x1e8] sm:$0xff]
        %v319 = vld [vmem:[#allocation7 + $0x1f0] sm:$0xff]
        %v320 = vld [vmem:[#allocation7 + $0x1f8] sm:$0xff]
        %v321 = vld [vmem:[#allocation9] sm:$0xff]
        %v323 = vlaneseq
        %v324 = vshrl.u32 %v323, 7
        %v325 = vsub.s32 0, %v324
        %v326 = vrot.slane %v321, %v325
        %v327 = vlaneseq
        %v328 = vshrl.u32 %v327, 7
        %v329 = vsub.s32 1, %v328
        %v330 = vrot.slane %v321, %v329
        %v331 = vlaneseq
        %v332 = vshrl.u32 %v331, 7
        %v333 = vsub.s32 2, %v332
        %v334 = vrot.slane %v321, %v333
        %v335 = vlaneseq
        %v336 = vshrl.u32 %v335, 7
        %v337 = vsub.s32 3, %v336
        %v338 = vrot.slane %v321, %v337
        %v339 = vlaneseq
        %v340 = vshrl.u32 %v339, 7
        %v341 = vsub.s32 4, %v340
        %v342 = vrot.slane %v321, %v341
        %v343 = vlaneseq
        %v344 = vshrl.u32 %v343, 7
        %v345 = vsub.s32 5, %v344
        %v346 = vrot.slane %v321, %v345
        %v347 = vlaneseq
        %v348 = vshrl.u32 %v347, 7
        %v349 = vsub.s32 6, %v348
        %v350 = vrot.slane %v321, %v349
        %v351 = vlaneseq
        %v352 = vshrl.u32 %v351, 7
        %v353 = vsub.s32 7, %v352
        %v354 = vrot.slane %v321, %v353
        %vm363 = vcmask 523264
        %v365 = vsel %vm363, %v255, 0
        %v368 = vsel %vm363, %v256, 0
        %370 = vmatprep.subr.mxu0 %v258
        %371 = vmatpush1.msra.mxu0 %v257
        %372 = vmatprep.subr.mxu0 %v266
        %373 = vmatpush1.msra.mxu0 %v265
        %374 = vmatprep.subr.mxu0 %v274
        %375 = vmatpush1.msra.mxu0 %v273
        %376 = vmatprep.subr.mxu0 %v282
        %377 = vmatpush1.msra.mxu0 %v281
        %378 = vmatprep.subr.mxu0 %v290
        %379 = vmatpush1.msra.mxu0 %v289
        %380 = vmatprep.subr.mxu0 %v298
        %381 = vmatpush1.msra.mxu0 %v297
        %382 = vmatprep.subr.mxu0 %v306
        %383 = vmatpush1.msra.mxu0 %v305
        %384 = vmatprep.subr.mxu0 %v314
        %385 = vmatpush1.msra.mxu0 %v313
        %386 = vmatprep.subr.mxu0 0.0
        %387 = vmatpush1.msra.mxu0 0.0
        %388 = vmatprep.subr.mxu0 0.0
        %389 = vmatpush1.msra.mxu0 0.0
        %390 = vmatprep.subr.mxu0 0.0
        %391 = vmatpush1.msra.mxu0 0.0
        %392 = vmatprep.subr.mxu0 0.0
        %393 = vmatpush1.msra.mxu0 0.0
        %394 = vmatprep.subr.mxu0 0.0
        %395 = vmatpush1.msra.mxu0 0.0
        %396 = vmatprep.subr.mxu0 0.0
        %397 = vmatpush1.msra.mxu0 0.0
        %398 = vmatprep.subr.mxu0 0.0
        %399 = vmatpush1.msra.mxu0 0.0
        %400 = vmatprep.subr.mxu0 0.0
        %401 = vmatpush1.msra.mxu0 0.0
        %402 = vmatprep.subr.mxu0 0.0
        %403 = vmatpush1.msra.mxu0 0.0
        %404 = vmatprep.subr.mxu0 0.0
        %405 = vmatpush1.msra.mxu0 0.0
        %406 = vmatprep.subr.mxu0 0.0
        %407 = vmatpush1.msra.mxu0 0.0
        %408 = vmatprep.subr.mxu0 0.0
        %409 = vmatpush1.msra.mxu0 0.0
        %410 = vmatprep.subr.mxu0 0.0
        %411 = vmatpush1.msra.mxu0 0.0
        %412 = vmatprep.subr.mxu0 0.0
        %413 = vmatpush1.msra.mxu0 0.0
        %414 = vmatprep.subr.mxu0 0.0
        %415 = vmatpush1.msra.mxu0 0.0
        %416 = vmatprep.subr.mxu0 0.0
        %417 = vmatpush1.msra.mxu0 0.0
        %418 = vmatprep.subr.mxu0 0.0
        %419 = vmatpush1.msra.mxu0 0.0
        %420 = vmatprep.subr.mxu0 0.0
        %421 = vmatpush1.msra.mxu0 0.0
        %422 = vmatprep.subr.mxu0 0.0
        %423 = vmatpush1.msra.mxu0 0.0
        %424 = vmatprep.subr.mxu0 0.0
        %425 = vmatpush1.msra.mxu0 0.0
        %426 = vmatprep.subr.mxu0 0.0
        %427 = vmatpush1.msra.mxu0 0.0
        %428 = vmatprep.subr.mxu0 0.0
        %429 = vmatpush1.msra.mxu0 0.0
        %430 = vmatprep.subr.mxu0 0.0
        %431 = vmatpush1.msra.mxu0 0.0
        %432 = vmatprep.subr.mxu0 0.0
        %433 = vmatpush1.msra.mxu0 0.0
        %434 = vmatprep.mubr.f32.mxu0 0.0
        %435 = vmatmul.mubr.f32.gmra.mrb[0].mxu0 %v365
        %v436 = vpop.f32.mrb[0].mxu0
        %v437 = vadd.f32 %v326, %v436
        %v438 = vpop.f32.mrb[0].mxu0
        %v439 = vadd.f32 %v330, %v438
        %440 = vmatprep.mubr.f32.mxu0 0.0
        %441 = vmatmul.mubr.f32.gmra.mrb[0].mxu0 %v368
        %v442 = vpop.f32.mrb[0].mxu0
        %v443 = vadd.f32 %v326, %v442
        %v444 = vpop.f32.mrb[0].mxu0
        %v445 = vadd.f32 %v330, %v444
        %446 = vdwg.mxu0
        %447 = vmatprep.subr.mxu0 %v260
        %448 = vmatpush1.msra.mxu0 %v259
        %449 = vmatprep.subr.mxu0 %v268
        %450 = vmatpush1.msra.mxu0 %v267
        %451 = vmatprep.subr.mxu0 %v276
        %452 = vmatpush1.msra.mxu0 %v275
        %453 = vmatprep.subr.mxu0 %v284
        %454 = vmatpush1.msra.mxu0 %v283
        %455 = vmatprep.subr.mxu0 %v292
        %456 = vmatpush1.msra.mxu0 %v291
        %457 = vmatprep.subr.mxu0 %v300
        %458 = vmatpush1.msra.mxu0 %v299
        %459 = vmatprep.subr.mxu0 %v308
        %460 = vmatpush1.msra.mxu0 %v307
        %461 = vmatprep.subr.mxu0 %v316
        %462 = vmatpush1.msra.mxu0 %v315
        %463 = vmatprep.subr.mxu0 0.0
        %464 = vmatpush1.msra.mxu0 0.0
        %465 = vmatprep.subr.mxu0 0.0
        %466 = vmatpush1.msra.mxu0 0.0
        %467 = vmatprep.subr.mxu0 0.0
        %468 = vmatpush1.msra.mxu0 0.0
        %469 = vmatprep.subr.mxu0 0.0
        %470 = vmatpush1.msra.mxu0 0.0
        %471 = vmatprep.subr.mxu0 0.0
        %472 = vmatpush1.msra.mxu0 0.0
        %473 = vmatprep.subr.mxu0 0.0
        %474 = vmatpush1.msra.mxu0 0.0
        %475 = vmatprep.subr.mxu0 0.0
        %476 = vmatpush1.msra.mxu0 0.0
        %477 = vmatprep.subr.mxu0 0.0
        %478 = vmatpush1.msra.mxu0 0.0
        %479 = vmatprep.subr.mxu0 0.0
        %480 = vmatpush1.msra.mxu0 0.0
        %481 = vmatprep.subr.mxu0 0.0
        %482 = vmatpush1.msra.mxu0 0.0
        %483 = vmatprep.subr.mxu0 0.0
        %484 = vmatpush1.msra.mxu0 0.0
        %485 = vmatprep.subr.mxu0 0.0
        %486 = vmatpush1.msra.mxu0 0.0
        %487 = vmatprep.subr.mxu0 0.0
        %488 = vmatpush1.msra.mxu0 0.0
        %489 = vmatprep.subr.mxu0 0.0
        %490 = vmatpush1.msra.mxu0 0.0
        %491 = vmatprep.subr.mxu0 0.0
        %492 = vmatpush1.msra.mxu0 0.0
        %493 = vmatprep.subr.mxu0 0.0
        %494 = vmatpush1.msra.mxu0 0.0
        %495 = vmatprep.subr.mxu0 0.0
        %496 = vmatpush1.msra.mxu0 0.0
        %497 = vmatprep.subr.mxu0 0.0
        %498 = vmatpush1.msra.mxu0 0.0
        %499 = vmatprep.subr.mxu0 0.0
        %500 = vmatpush1.msra.mxu0 0.0
        %501 = vmatprep.subr.mxu0 0.0
        %502 = vmatpush1.msra.mxu0 0.0
        %503 = vmatprep.subr.mxu0 0.0
        %504 = vmatpush1.msra.mxu0 0.0
        %505 = vmatprep.subr.mxu0 0.0
        %506 = vmatpush1.msra.mxu0 0.0
        %507 = vmatprep.subr.mxu0 0.0
        %508 = vmatpush1.msra.mxu0 0.0
        %509 = vmatprep.subr.mxu0 0.0
        %510 = vmatpush1.msra.mxu0 0.0
        %511 = vmatprep.mubr.f32.mxu0 0.0
        %512 = vmatmul.mubr.f32.gmra.mrb[0].mxu0 %v365
        %v513 = vpop.f32.mrb[0].mxu0
        %v514 = vadd.f32 %v334, %v513
        %v515 = vpop.f32.mrb[0].mxu0
        %v516 = vadd.f32 %v338, %v515
        %517 = vmatprep.mubr.f32.mxu0 0.0
        %518 = vmatmul.mubr.f32.gmra.mrb[0].mxu0 %v368
        %v519 = vpop.f32.mrb[0].mxu0
        %v520 = vadd.f32 %v334, %v519
        %v521 = vpop.f32.mrb[0].mxu0
        %v522 = vadd.f32 %v338, %v521
        %523 = vdwg.mxu0
        %524 = vmatprep.subr.mxu0 %v262
        %525 = vmatpush1.msra.mxu0 %v261
        %526 = vmatprep.subr.mxu0 %v270
        %527 = vmatpush1.msra.mxu0 %v269
        %528 = vmatprep.subr.mxu0 %v278
        %529 = vmatpush1.msra.mxu0 %v277
        %530 = vmatprep.subr.mxu0 %v286
        %531 = vmatpush1.msra.mxu0 %v285
        %532 = vmatprep.subr.mxu0 %v294
        %533 = vmatpush1.msra.mxu0 %v293
        %534 = vmatprep.subr.mxu0 %v302
        %535 = vmatpush1.msra.mxu0 %v301
        %536 = vmatprep.subr.mxu0 %v310
        %537 = vmatpush1.msra.mxu0 %v309
        %538 = vmatprep.subr.mxu0 %v318
        %539 = vmatpush1.msra.mxu0 %v317
        %540 = vmatprep.subr.mxu0 0.0
        %541 = vmatpush1.msra.mxu0 0.0
        %542 = vmatprep.subr.mxu0 0.0
        %543 = vmatpush1.msra.mxu0 0.0
        %544 = vmatprep.subr.mxu0 0.0
        %545 = vmatpush1.msra.mxu0 0.0
        %546 = vmatprep.subr.mxu0 0.0
        %547 = vmatpush1.msra.mxu0 0.0
        %548 = vmatprep.subr.mxu0 0.0
        %549 = vmatpush1.msra.mxu0 0.0
        %550 = vmatprep.subr.mxu0 0.0
        %551 = vmatpush1.msra.mxu0 0.0
        %552 = vmatprep.subr.mxu0 0.0
        %553 = vmatpush1.msra.mxu0 0.0
        %554 = vmatprep.subr.mxu0 0.0
        %555 = vmatpush1.msra.mxu0 0.0
        %556 = vmatprep.subr.mxu0 0.0
        %557 = vmatpush1.msra.mxu0 0.0
        %558 = vmatprep.subr.mxu0 0.0
        %559 = vmatpush1.msra.mxu0 0.0
        %560 = vmatprep.subr.mxu0 0.0
        %561 = vmatpush1.msra.mxu0 0.0
        %562 = vmatprep.subr.mxu0 0.0
        %563 = vmatpush1.msra.mxu0 0.0
        %564 = vmatprep.subr.mxu0 0.0
        %565 = vmatpush1.msra.mxu0 0.0
        %566 = vmatprep.subr.mxu0 0.0
        %567 = vmatpush1.msra.mxu0 0.0
        %568 = vmatprep.subr.mxu0 0.0
        %569 = vmatpush1.msra.mxu0 0.0
        %570 = vmatprep.subr.mxu0 0.0
        %571 = vmatpush1.msra.mxu0 0.0
        %572 = vmatprep.subr.mxu0 0.0
        %573 = vmatpush1.msra.mxu0 0.0
        %574 = vmatprep.subr.mxu0 0.0
        %575 = vmatpush1.msra.mxu0 0.0
        %576 = vmatprep.subr.mxu0 0.0
        %577 = vmatpush1.msra.mxu0 0.0
        %578 = vmatprep.subr.mxu0 0.0
        %579 = vmatpush1.msra.mxu0 0.0
        %580 = vmatprep.subr.mxu0 0.0
        %581 = vmatpush1.msra.mxu0 0.0
        %582 = vmatprep.subr.mxu0 0.0
        %583 = vmatpush1.msra.mxu0 0.0
        %584 = vmatprep.subr.mxu0 0.0
        %585 = vmatpush1.msra.mxu0 0.0
        %586 = vmatprep.subr.mxu0 0.0
        %587 = vmatpush1.msra.mxu0 0.0
        %588 = vmatprep.mubr.f32.mxu0 0.0
        %589 = vmatmul.mubr.f32.gmra.mrb[0].mxu0 %v365
        %v590 = vpop.f32.mrb[0].mxu0
        %v591 = vadd.f32 %v342, %v590
        %v592 = vpop.f32.mrb[0].mxu0
        %v593 = vadd.f32 %v346, %v592
        %594 = vmatprep.mubr.f32.mxu0 0.0
        %595 = vmatmul.mubr.f32.gmra.mrb[0].mxu0 %v368
        %v596 = vpop.f32.mrb[0].mxu0
        %v597 = vadd.f32 %v342, %v596
        %v598 = vpop.f32.mrb[0].mxu0
        %v599 = vadd.f32 %v346, %v598
        %600 = vdwg.mxu0
        %601 = vmatprep.subr.mxu0 %v264
        %602 = vmatpush1.msra.mxu0 %v263
        %603 = vmatprep.subr.mxu0 %v272
        %604 = vmatpush1.msra.mxu0 %v271
        %605 = vmatprep.subr.mxu0 %v280
        %606 = vmatpush1.msra.mxu0 %v279
        %607 = vmatprep.subr.mxu0 %v288
        %608 = vmatpush1.msra.mxu0 %v287
        %609 = vmatprep.subr.mxu0 %v296
        %610 = vmatpush1.msra.mxu0 %v295
        %611 = vmatprep.subr.mxu0 %v304
        %612 = vmatpush1.msra.mxu0 %v303
        %613 = vmatprep.subr.mxu0 %v312
        %614 = vmatpush1.msra.mxu0 %v311
        %615 = vmatprep.subr.mxu0 %v320
        %616 = vmatpush1.msra.mxu0 %v319
        %617 = vmatprep.subr.mxu0 0.0
        %618 = vmatpush1.msra.mxu0 0.0
        %619 = vmatprep.subr.mxu0 0.0
        %620 = vmatpush1.msra.mxu0 0.0
        %621 = vmatprep.subr.mxu0 0.0
        %622 = vmatpush1.msra.mxu0 0.0
        %623 = vmatprep.subr.mxu0 0.0
        %624 = vmatpush1.msra.mxu0 0.0
        %625 = vmatprep.subr.mxu0 0.0
        %626 = vmatpush1.msra.mxu0 0.0
        %627 = vmatprep.subr.mxu0 0.0
        %628 = vmatpush1.msra.mxu0 0.0
        %629 = vmatprep.subr.mxu0 0.0
        %630 = vmatpush1.msra.mxu0 0.0
        %631 = vmatprep.subr.mxu0 0.0
        %632 = vmatpush1.msra.mxu0 0.0
        %633 = vmatprep.subr.mxu0 0.0
        %634 = vmatpush1.msra.mxu0 0.0
        %635 = vmatprep.subr.mxu0 0.0
        %636 = vmatpush1.msra.mxu0 0.0
        %637 = vmatprep.subr.mxu0 0.0
        %638 = vmatpush1.msra.mxu0 0.0
        %639 = vmatprep.subr.mxu0 0.0
        %640 = vmatpush1.msra.mxu0 0.0
        %641 = vmatprep.subr.mxu0 0.0
        %642 = vmatpush1.msra.mxu0 0.0
        %643 = vmatprep.subr.mxu0 0.0
        %644 = vmatpush1.msra.mxu0 0.0
        %645 = vmatprep.subr.mxu0 0.0
        %646 = vmatpush1.msra.mxu0 0.0
        %647 = vmatprep.subr.mxu0 0.0
        %648 = vmatpush1.msra.mxu0 0.0
        %649 = vmatprep.subr.mxu0 0.0
        %650 = vmatpush1.msra.mxu0 0.0
        %651 = vmatprep.subr.mxu0 0.0
        %652 = vmatpush1.msra.mxu0 0.0
        %653 = vmatprep.subr.mxu0 0.0
        %654 = vmatpush1.msra.mxu0 0.0
        %655 = vmatprep.subr.mxu0 0.0
        %656 = vmatpush1.msra.mxu0 0.0
        %657 = vmatprep.subr.mxu0 0.0
        %658 = vmatpush1.msra.mxu0 0.0
        %659 = vmatprep.subr.mxu0 0.0
        %660 = vmatpush1.msra.mxu0 0.0
        %661 = vmatprep.subr.mxu0 0.0
        %662 = vmatpush1.msra.mxu0 0.0
        %663 = vmatprep.subr.mxu0 0.0
        %664 = vmatpush1.msra.mxu0 0.0
        %665 = vmatprep.mubr.f32.mxu0 0.0
        %666 = vmatmul.mubr.f32.gmra.mrb[0].mxu0 %v365
        %v667 = vpop.f32.mrb[0].mxu0
        %v668 = vadd.f32 %v350, %v667
        %v669 = vpop.f32.mrb[0].mxu0
        %v670 = vadd.f32 %v354, %v669
        %671 = vmatprep.mubr.f32.mxu0 0.0
        %672 = vmatmul.mubr.f32.gmra.mrb[0].mxu0 %v368
        %v673 = vpop.f32.mrb[0].mxu0
        %v674 = vadd.f32 %v350, %v673
        %v675 = vpop.f32.mrb[0].mxu0
        %v676 = vadd.f32 %v354, %v675
        %677 = vdwg.mxu0
        // Predicated region
        $region49: #{tpu_custom_call.1} parent=31 // pred_check
          %p678 = pneg %p244
        $region50: #{tpu_custom_call.1} parent=31 // pred_check_branch
          %680 = sbr.rel (%p678) target = $region52
        $region51: #{tpu_custom_call.1} parent=31 // pred_region
          %v681 = vld [vmem:[#allocation2] sm:$0xff]
          %v682 = vld [vmem:[#allocation2 + $0x8] sm:$0xff]
          %v683 = vmax.f32 %v437, %v514
          %v684 = vmax.f32 %v439, %v516
          %v685 = vmax.f32 %v683, %v591
          %v686 = vmax.f32 %v684, %v593
          %v687 = vmax.f32 %v685, %v668
          %v688 = vmax.f32 %v686, %v670
          %v689 = vmax.f32 %v687, %v688
          %690 = vmax.xlane.f32.xlu0 %v689
          %v691 = vpop.xlane.xlu0 %690
          %v692 = vmax.f32 %v443, %v520
          %v693 = vmax.f32 %v445, %v522
          %v694 = vmax.f32 %v692, %v597
          %v695 = vmax.f32 %v693, %v599
          %v696 = vmax.f32 %v694, %v674
          %v697 = vmax.f32 %v695, %v676
          %v698 = vmax.f32 %v696, %v697
          %699 = vmax.xlane.f32.xlu0 %v698
          %v700 = vpop.xlane.xlu0 %699
          %v701 = vmax.f32 %v681, %v691
          %v702 = vmax.f32 %v682, %v700
          %v703 = vld [vmem:[#allocation3] sm:$0xff]
          %v704 = vld [vmem:[#allocation3 + $0x8] sm:$0xff]
          %v705 = vsub.f32 %v681, %v701
          %v706 = vsub.f32 %v682, %v702
          %v707 = vmul.f32 %v705, 1.442695
          %v708 = vpow.pop %v707
          %v709 = vmul.f32 %v706, 1.442695
          %v710 = vpow.pop %v709
          %v711 = vmul.f32 %v703, %v708
          %v712 = vmul.f32 %v704, %v710
          %714 = vset.pattern.permute.xlu0 0
          %715 = vperm.xlu0 %714, %v701
          %v716 = vpop.permute.xlu0 %715
          %719 = vset.pattern.permute.xlu0 0
          %720 = vperm.xlu0 %719, %v702
          %v721 = vpop.permute.xlu0 %720
          %v723 = vsub.f32 %v437, %v716
          %v724 = vsub.f32 %v439, %v716
          %v725 = vsub.f32 %v514, %v716
          %v726 = vsub.f32 %v516, %v716
          %v727 = vsub.f32 %v591, %v716
          %v728 = vsub.f32 %v593, %v716
          %v729 = vsub.f32 %v668, %v716
          %v730 = vsub.f32 %v670, %v716
          %v731 = vsub.f32 %v443, %v721
          %v732 = vsub.f32 %v445, %v721
          %v733 = vsub.f32 %v520, %v721
          %v734 = vsub.f32 %v522, %v721
          %v735 = vsub.f32 %v597, %v721
          %v736 = vsub.f32 %v599, %v721
          %v737 = vsub.f32 %v674, %v721
          %v738 = vsub.f32 %v676, %v721
          %v739 = vmul.f32 %v723, 1.442695
          %v740 = vpow.pop %v739
          %v741 = vmul.f32 %v724, 1.442695
          %v742 = vpow.pop %v741
          %v743 = vmul.f32 %v725, 1.442695
          %v744 = vpow.pop %v743
          %v745 = vmul.f32 %v726, 1.442695
          %v746 = vpow.pop %v745
          %v747 = vmul.f32 %v727, 1.442695
          %v748 = vpow.pop %v747
          %v749 = vmul.f32 %v728, 1.442695
          %v750 = vpow.pop %v749
          %v751 = vmul.f32 %v729, 1.442695
          %v752 = vpow.pop %v751
          %v753 = vmul.f32 %v730, 1.442695
          %v754 = vpow.pop %v753
          %v755 = vmul.f32 %v731, 1.442695
          %v756 = vpow.pop %v755
          %v757 = vmul.f32 %v732, 1.442695
          %v758 = vpow.pop %v757
          %v759 = vmul.f32 %v733, 1.442695
          %v760 = vpow.pop %v759
          %v761 = vmul.f32 %v734, 1.442695
          %v762 = vpow.pop %v761
          %v763 = vmul.f32 %v735, 1.442695
          %v764 = vpow.pop %v763
          %v765 = vmul.f32 %v736, 1.442695
          %v766 = vpow.pop %v765
          %v767 = vmul.f32 %v737, 1.442695
          %v768 = vpow.pop %v767
          %v769 = vmul.f32 %v738, 1.442695
          %v770 = vpow.pop %v769
          %v771 = vadd.f32 %v740, %v742
          %v772 = vadd.f32 %v771, %v744
          %v773 = vadd.f32 %v772, %v746
          %v774 = vadd.f32 %v773, %v748
          %v775 = vadd.f32 %v774, %v750
          %v776 = vadd.f32 %v775, %v752
          %v777 = vadd.f32 %v776, %v754
          %778 = vadd.xlane.f32.xlu0 %v777
          %v779 = vpop.xlane.xlu0 %778
          %v780 = vadd.f32 %v756, %v758
          %v781 = vadd.f32 %v780, %v760
          %v782 = vadd.f32 %v781, %v762
          %v783 = vadd.f32 %v782, %v764
          %v784 = vadd.f32 %v783, %v766
          %v785 = vadd.f32 %v784, %v768
          %v786 = vadd.f32 %v785, %v770
          %787 = vadd.xlane.f32.xlu0 %v786
          %v788 = vpop.xlane.xlu0 %787
          %v789 = vadd.f32 %v711, %v779
          %v790 = vadd.f32 %v712, %v788
          %vm791 = vcmask 7168
          %792 = vst.msk [vmem:[#allocation3] sm:$0xff] %vm791, %v789
          %793 = vst.msk [vmem:[#allocation3 + $0x8] sm:$0xff] %vm791, %v790
          %794 = vst.msk [vmem:[#allocation2] sm:$0xff] %vm791, %v701
          %795 = vst.msk [vmem:[#allocation2 + $0x8] sm:$0xff] %vm791, %v702
          %796 = vst [vmem:[%s237] sm:$0xff] %v437
          %797 = vst [vmem:[%s237 + $0x8] sm:$0xff] %v439
          %798 = vst [vmem:[%s237 + $0x10] sm:$0xff] %v514
          %799 = vst [vmem:[%s237 + $0x18] sm:$0xff] %v516
          %800 = vst [vmem:[%s237 + $0x20] sm:$0xff] %v591
          %801 = vst [vmem:[%s237 + $0x28] sm:$0xff] %v593
          %802 = vst [vmem:[%s237 + $0x30] sm:$0xff] %v668
          %803 = vst [vmem:[%s237 + $0x38] sm:$0xff] %v670
          %804 = vst [vmem:[%s237 + $0x40] sm:$0xff] %v443
          %805 = vst [vmem:[%s237 + $0x48] sm:$0xff] %v445
          %806 = vst [vmem:[%s237 + $0x50] sm:$0xff] %v520
          %807 = vst [vmem:[%s237 + $0x58] sm:$0xff] %v522
          %808 = vst [vmem:[%s237 + $0x60] sm:$0xff] %v597
          %809 = vst [vmem:[%s237 + $0x68] sm:$0xff] %v599
          %810 = vst [vmem:[%s237 + $0x70] sm:$0xff] %v674
          %811 = vst [vmem:[%s237 + $0x78] sm:$0xff] %v676
        $region52: #{tpu_custom_call.1} parent=31 // pred_fallthru
          _
        %p812 = scmp.eq.s32.totalorder %s25, 1
        // Predicated region
        $region53: #{tpu_custom_call.1} parent=31 // pred_check
          %p813 = pneg %p812
        $region54: #{tpu_custom_call.1} parent=31 // pred_check_branch
          %815 = sbr.rel (%p813) target = $region56
        $region55: #{tpu_custom_call.1} parent=31 // pred_region
          %v816 = vld [vmem:[#allocation2] sm:$0xff]
          %v817 = vld [vmem:[#allocation2 + $0x8] sm:$0xff]
          %v818 = vld [vmem:[#allocation3] sm:$0xff]
          %v819 = vld [vmem:[#allocation3 + $0x8] sm:$0xff]
          %v820 = vlog2.pop %v818
          %v821 = vmul.f32 %v820, 0.6931472
          %v822 = vlog2.pop %v819
          %v823 = vmul.f32 %v822, 0.6931472
          %v824 = vadd.f32 %v816, %v821
          %v825 = vadd.f32 %v817, %v823
          %827 = vset.pattern.permute.xlu0 0
          %828 = vperm.xlu0 %827, %v824
          %v829 = vpop.permute.xlu0 %828
          %832 = vset.pattern.permute.xlu0 0
          %833 = vperm.xlu0 %832, %v825
          %v834 = vpop.permute.xlu0 %833
          %v836 = vsub.f32 %v437, %v829
          %v837 = vsub.f32 %v439, %v829
          %v838 = vsub.f32 %v514, %v829
          %v839 = vsub.f32 %v516, %v829
          %v840 = vsub.f32 %v591, %v829
          %v841 = vsub.f32 %v593, %v829
          %v842 = vsub.f32 %v668, %v829
          %v843 = vsub.f32 %v670, %v829
          %v844 = vsub.f32 %v443, %v834
          %v845 = vsub.f32 %v445, %v834
          %v846 = vsub.f32 %v520, %v834
          %v847 = vsub.f32 %v522, %v834
          %v848 = vsub.f32 %v597, %v834
          %v849 = vsub.f32 %v599, %v834
          %v850 = vsub.f32 %v674, %v834
          %v851 = vsub.f32 %v676, %v834
          %852 = vst [vmem:[%s237] sm:$0xff] %v836
          %853 = vst [vmem:[%s237 + $0x8] sm:$0xff] %v837
          %854 = vst [vmem:[%s237 + $0x10] sm:$0xff] %v838
          %855 = vst [vmem:[%s237 + $0x18] sm:$0xff] %v839
          %856 = vst [vmem:[%s237 + $0x20] sm:$0xff] %v840
          %857 = vst [vmem:[%s237 + $0x28] sm:$0xff] %v841
          %858 = vst [vmem:[%s237 + $0x30] sm:$0xff] %v842
          %859 = vst [vmem:[%s237 + $0x38] sm:$0xff] %v843
          %860 = vst [vmem:[%s237 + $0x40] sm:$0xff] %v844
          %861 = vst [vmem:[%s237 + $0x48] sm:$0xff] %v845
          %862 = vst [vmem:[%s237 + $0x50] sm:$0xff] %v846
          %863 = vst [vmem:[%s237 + $0x58] sm:$0xff] %v847
          %864 = vst [vmem:[%s237 + $0x60] sm:$0xff] %v848
          %865 = vst [vmem:[%s237 + $0x68] sm:$0xff] %v849
          %866 = vst [vmem:[%s237 + $0x70] sm:$0xff] %v850
          %867 = vst [vmem:[%s237 + $0x78] sm:$0xff] %v851
        $region56: #{tpu_custom_call.1} parent=31 // pred_fallthru
          _
        %s868 = sand.u32 %s128, 1
        %s869 = scalar_lea.sflag [#allocation6], %s868
        %s870 = sand.u32 %s128, 1
        %s871 = smul.addr %s870, 128
        %s872 = scalar_lea.vmem [#allocation10], %s871
        // Predicated region
        $region57: #{tpu_custom_call.1} parent=31 // pred_check
          %p873 = pneg %p138
        $region58: #{tpu_custom_call.1} parent=31 // pred_check_branch
          %875 = sbr.rel (%p873) target = $region60
        $region59: #{tpu_custom_call.1} parent=31 // pred_region
          %s876 = smul.u32 %s25, %s26
          %s877 = smul.u32 2, %s24
          %s878 = smul.u32 8, %s876
          %s880 = ssub.s32 2048, 2048
          %881 = vsyncadd %s869, %s880
          %s882 = smul.addr %s877, 8
          %s883 = sadd.s32 %s878, %s882
          %s884 = smul.addr %s883, 128
          %s885 = scalar_lea.hbm %s3, %s884
          %s886 = sshll.u32 %s872, 4
          %s887 = int_to_ptr.vmem [resolvable:$true] %s886
          %892 = dma.vmem_to_hbm [thread:$0]  %s887, 2048, %s885, %s869, 1024, 1024, 64
        $region60: #{tpu_custom_call.1} parent=31 // pred_fallthru
          _
      $region32: #{tpu_custom_call.1} parent=5 // pred_fallthru
        _
      %p893 = scmp.le.s32.totalorder 2, %s14
      // Predicated region
      $region61: #{tpu_custom_call.1} parent=5 // pred_check
        %p894 = pneg %p893
      $region62: #{tpu_custom_call.1} parent=5 // pred_check_branch
        %896 = sbr.rel (%p894) target = $region64
      $region63: #{tpu_custom_call.1} parent=5 // pred_region
        %s897 = ssub.s32 %s14, 2
        // Predicated region
        $region65: #{tpu_custom_call.1} parent=63 // pred_check
          %p898 = pneg %p144
        $region66: #{tpu_custom_call.1} parent=63 // pred_check_branch
          %900 = sbr.rel (%p898) target = $region68
        $region67: #{tpu_custom_call.1} parent=63 // pred_region
          %s901 = sand.u32 %s129, 1
          %s902 = scalar_lea.sflag [#allocation6], %s901
          %s903 = sand.u32 %s129, 1
          %s904 = smul.addr %s903, 128
          %s905 = scalar_lea.vmem [#allocation10], %s904
          %906 = dma.done %s902, 2048
        $region68: #{tpu_custom_call.1} parent=63 // pred_fallthru
          _
      $region64: #{tpu_custom_call.1} parent=5 // pred_fallthru
        _
    $region6: #{tpu_custom_call.1} parent=1 // loop_footer
      %s18 = sadd.s32 1, %s14
    $region7: #{tpu_custom_call.1} parent=1 // loop_footer_branch
      %13 = sbr.rel target = $region3
    $region8: #{tpu_custom_call.1} parent=1 // loop_exit
      _
    %907 = vsyncpa [#allocation5], 1
    %s908 = scalar_lea.sflag [#allocation5], 1
    %909 = vsyncpa %s908, 1
    %910 = vsyncpa [#allocation8], 1
    %911 = vsyncpa [#allocation6], 1
    %s912 = scalar_lea.sflag [#allocation6], 1
    %913 = vsyncpa %s912, 1

</llo_original>
